<compile_context>
chip_gen: v7x
topology: tpu7x:2x2x1
jax: 0.10.0
libtpu: 0.0.40
codegen_flags: <defaults>
</compile_context>

<pallas_src>
import functools

import jax
import jax.numpy as jnp
from jax.experimental import pallas as pl
from jax.experimental.pallas import tpu as pltpu


_LANE = 128
_SUBLANE = 8
_TARGET_TILE_BYTES = 4 * 1024 * 1024   # ~4 MiB input tiles reach HBM roofline
_MIN_GRID_BLOCKS = 8                   # keep pipelining + v7x megacore fed

_vmem_cap_cache = None


def _round_up(x: int, m: int) -> int:
    return ((x + m - 1) // m) * m


def _round_down8(x: int) -> int:
    return max(_SUBLANE, (x // _SUBLANE) * _SUBLANE)


def _vmem_capacity_bytes() -> int:
    """Physical VMEM per TensorCore; conservative 64 MiB (v7x) if unqueryable."""
    global _vmem_cap_cache
    if _vmem_cap_cache is None:
        try:
            _vmem_cap_cache = int(pltpu.get_tpu_info().vmem_capacity_bytes)
        except Exception:
            _vmem_cap_cache = 64 * 1024 * 1024
    return _vmem_cap_cache


def _vmem_limit_bytes() -> int:
    # <= ~48 MiB on 64-MiB parts (v7x), <= 96 MiB on 128-MiB parts (v5e/v6e).
    return min((_vmem_capacity_bytes() * 3) // 4, 96 * 1024 * 1024)


def _choose_tile_rows(bc: int, s_pad: int, itemsize: int) -> int:
    """Row-tile size: big enough for the HBM roofline, small enough for VMEM
    (including compiler temporaries) and for a grid long enough to keep
    double-buffering and the second v7x TensorCore busy."""
    # Per tile row: double-buffered in+out pipeline tiles (native dtype),
    # ~3 tile-sized f32 in-kernel temporaries (f32 cast / d*d / where),
    # and the lane-padded (rows, 2)->(rows, 128) stat blocks.
    per_row = (2 * 2 * s_pad * itemsize
               + 3 * s_pad * 4
               + 2 * 2 * _LANE * 4)
    budget = _vmem_limit_bytes() // 2          # leave headroom for Mosaic scratch
    tm_vmem = max(_SUBLANE, budget // per_row)
    tm_target = max(_SUBLANE, _TARGET_TILE_BYTES // max(1, s_pad * itemsize))
    tm = min(tm_vmem, tm_target)
    # Never collapse to a single (or tiny) grid when there are enough rows.
    tm_grid = max(_SUBLANE, bc // _MIN_GRID_BLOCKS)
    tm = min(tm, tm_grid)
    # NOTE: extremely large S (>~ 512*512 with f32) would additionally need a
    # 2-D (reduction) tiling of S; not needed for the shapes this module sees.
    return _round_down8(tm)


def _nnz_norm_kernel(scalars_ref, d_ref, prev_stats_ref, out_ref, new_stats_ref):
    """One grid step over a (TM, S_pad) row tile.

    scalars_ref:    SMEM f32[2]              = [k, first_flag]
    d_ref:          VMEM <in dtype>[TM, S]   input tile (native dtype, cast here)
    prev_stats_ref: VMEM f32[TM, 2]          previous [mean, std] (ignored if first)
    out_ref:        VMEM <in dtype>[TM, S]   normalized output tile
    new_stats_ref:  VMEM f32[TM, 2]          updated [mean, std]
    """
    k = scalars_ref[0]
    first = scalars_ref[1]

    d = d_ref[...].astype(jnp.float32)   # cast in VMEM, not in a wrapper HBM pass

    # One-pass sufficient statistics over the lane axis: count, sum(d), sum(d*d).
    # Zeros (including lane padding) contribute nothing to either sum, so these
    # are exactly the non-zero statistics.
    nnz = jnp.sum((d != 0.0).astype(jnp.float32), axis=-1, keepdims=True)
    count = jnp.maximum(nnz, 1.0)
    inv_count = pl.reciprocal(count, approx=False)
    s1 = jnp.sum(d, axis=-1, keepdims=True)
    s2 = jnp.sum(d * d, axis=-1, keepdims=True)

    mean = s1 * inv_count
    var = jnp.maximum(s2 * inv_count - mean * mean, 1e-6)
    std = jnp.sqrt(var)

    # Running-average update (first call adopts the batch statistics).
    batch_stats = jnp.concatenate([mean, std], axis=-1)          # (TM, 2)
    new_stats = jnp.where(first > 0.5, batch_stats,
                          k * prev_stats_ref[...] + (1.0 - k) * batch_stats)
    new_stats_ref[...] = new_stats

    # Per-row reciprocal + per-element multiply instead of a full-tile divide;
    # the non-zero mask is re-derived here instead of being kept live.
    ra_mean = new_stats[:, 0:1]
    inv_std = pl.reciprocal(new_stats[:, 1:2], approx=False)
    out_ref[...] = jnp.where(d != 0.0,
                             (d - ra_mean) * inv_std,
                             0.0).astype(out_ref.dtype)


def _nnz_norm_call_impl(d2, prev_stats, scalars, *, tile_rows, vmem_limit_bytes):
    bc, s = d2.shape
    s_pad = _round_up(max(s, 1), _LANE)
    if s_pad != s:
        # Zero padding is semantically neutral (zeros are masked out of the NNZ
        # stats) and makes every load/store lane-dense.
        d2 = jnp.pad(d2, ((0, 0), (0, s_pad - s)))

    grid = (pl.cdiv(bc, tile_rows),)
    out, new_stats = pl.pallas_call(
        _nnz_norm_kernel,
        out_shape=(
            jax.ShapeDtypeStruct((bc, s_pad), d2.dtype),
            jax.ShapeDtypeStruct((bc, 2), jnp.float32),
        ),
        grid=grid,
        in_specs=[
            pl.BlockSpec(memory_space=pltpu.SMEM),                  # [k, first]
            pl.BlockSpec((tile_rows, s_pad), lambda i: (i, 0)),     # d tile
            pl.BlockSpec((tile_rows, 2), lambda i: (i, 0)),         # prev stats
        ],
        out_specs=(
            pl.BlockSpec((tile_rows, s_pad), lambda i: (i, 0)),     # out tile
            pl.BlockSpec((tile_rows, 2), lambda i: (i, 0)),         # new stats
        ),
        # Alias the previous running stats onto the updated ones.
        input_output_aliases={2: 1},
        compiler_params=pltpu.CompilerParams(
            dimension_semantics=("parallel",),   # rows are independent
            vmem_limit_bytes=vmem_limit_bytes,
        ),
    )(scalars, d2, prev_stats)

    if s_pad != s:
        out = out[:, :s]
    return out, new_stats


# prev_stats (arg 1) is donated so the input_output_aliases above is backed by
# a real in-place buffer instead of a defensive XLA copy.
_nnz_norm_call = jax.jit(
    _nnz_norm_call_impl,
    static_argnames=("tile_rows", "vmem_limit_bytes"),
    donate_argnums=(1,),
)


class RunningAverageNNZnormalizer:
    """JAX/Pallas port of the PyTorch RunningAverageNNZnormalizer (forward only)."""

    def __init__(self, k: float, k_trainable: bool = False, tile_rows=None) -> None:
        # TODO(synk): k_trainable (nn.Parameter with grad) has no gradient path here;
        # k is carried as a plain scalar constant.
        self.k = float(k)
        self.tile_rows = tile_rows  # optional override, mostly for testing
        self.first = True
        self.ra_stats = None        # packed (B*C, 2) f32 [mean, std]
        self.ra_mean = None         # user-facing (B, C, 1, 1) / (B, C, 1)
        self.ra_std = None

    def reset_states(self) -> None:
        self.first = True
        self.ra_stats = None
        self.ra_mean = None
        self.ra_std = None

    def __call__(self, d):
        if d.ndim == 4:
            B, C, H, W = d.shape
            spatial = H * W
            stat_shape = (B, C, 1, 1)
        elif d.ndim == 3:
            B, C, H = d.shape
            spatial = H
            stat_shape = (B, C, 1)
        else:
            raise ValueError("Wrong input size")

        bc = B * C
        # Keep the input's native dtype (bf16/f16/f32); the kernel casts in VMEM.
        d2 = d.reshape(bc, spatial)

        if self.first or self.ra_stats is None:
            prev_stats = jnp.concatenate(
                [jnp.zeros((bc, 1), jnp.float32), jnp.ones((bc, 1), jnp.float32)],
                axis=-1)
            first_flag = 1.0
        else:
            prev_stats = self.ra_stats
            first_flag = 0.0

        scalars = jnp.array([self.k, first_flag], dtype=jnp.float32)

        s_pad = _round_up(max(spatial, 1), _LANE)
        itemsize = jnp.dtype(d2.dtype).itemsize
        if self.tile_rows is not None:
            tile_rows = int(self.tile_rows)
        else:
            tile_rows = _choose_tile_rows(bc, s_pad, itemsize)
        if tile_rows >= bc:
            tile_rows = bc  # single full-extent block (only for tiny B*C)
        else:
            tile_rows = _round_down8(tile_rows)

        out2, new_stats = _nnz_norm_call(
            d2, prev_stats, scalars,
            tile_rows=tile_rows, vmem_limit_bytes=_vmem_limit_bytes())

        self.ra_stats = new_stats
        self.ra_mean = new_stats[:, 0].reshape(stat_shape)
        self.ra_std = new_stats[:, 1].reshape(stat_shape)
        self.first = False

        return out2.reshape(d.shape)


# ---------------------------------------------------------------------------
# Pure-JAX reference (mirrors the PyTorch semantics) for sanity checks.
# ---------------------------------------------------------------------------
def _ref_forward(d, ra_mean, ra_std, k, first):
    axes = tuple(range(2, d.ndim))
    mask = (d != 0.0).astype(jnp.float32)
    count = jnp.maximum(jnp.sum(mask, axis=axes, keepdims=True), 1.0)
    mean = jnp.sum(d, axis=axes, keepdims=True) / count
    d_c = (d - mean) * mask
    std = jnp.sqrt(jnp.maximum(jnp.sum(d_c ** 2, axis=axes, keepdims=True) / count, 1e-6))
    if first:
        new_mean, new_std = mean, std
    else:
        new_mean = k * ra_mean + (1.0 - k) * mean
        new_std = k * ra_std + (1.0 - k) * std
    out = (d - new_mean) / new_std * mask
    return out, new_mean, new_std


def _check(actual, expected, msg, atol=5e-5, rtol=5e-5):
    assert jnp.allclose(jnp.asarray(actual, jnp.float32),
                        jnp.asarray(expected, jnp.float32),
                        atol=atol, rtol=rtol), msg


if __name__ == "__main__":
    key = jax.random.PRNGKey(0)
    k1, k2, k3, k4, k5, k6 = jax.random.split(key, 6)

    # ---------------- 4-D case, aligned spatial ----------------
    B, C, H, W = 2, 4, 16, 16
    x = jax.random.normal(k1, (B, C, H, W), dtype=jnp.float32)
    keep = (jax.random.uniform(k2, (B, C, H, W)) > 0.3).astype(jnp.float32)
    x = x * keep

    norm = RunningAverageNNZnormalizer(k=0.9)
    y = jax.block_until_ready(norm(x))                       # first call: adopt batch stats
    y_ref, m_ref, s_ref = _ref_forward(x, None, None, 0.9, first=True)
    _check(y, y_ref, "output mismatch (first call)")
    _check(norm.ra_mean, m_ref, "ra_mean mismatch (first call)")
    _check(norm.ra_std, s_ref, "ra_std mismatch (first call)")

    x2 = x * 0.5 + 0.1 * keep
    y2 = jax.block_until_ready(norm(x2))                     # second call: running update
    y2_ref, m2_ref, s2_ref = _ref_forward(x2, m_ref, s_ref, 0.9, first=False)
    _check(y2, y2_ref, "output mismatch (second call)")
    _check(norm.ra_mean, m2_ref, "ra_mean mismatch (second call)")

    # ---------------- multi-block grid (forced small tile) ----------------
    B2, C2, H2, W2 = 2, 32, 8, 16                            # BC = 64, S = 128 -> 8 blocks
    xb = jax.random.normal(k3, (B2, C2, H2, W2), dtype=jnp.float32)
    keep_b = (jax.random.uniform(k4, (B2, C2, H2, W2)) > 0.4).astype(jnp.float32)
    xb = xb * keep_b

    norm_b = RunningAverageNNZnormalizer(k=0.8, tile_rows=8)
    yb = jax.block_until_ready(norm_b(xb))
    yb_ref, mb_ref, sb_ref = _ref_forward(xb, None, None, 0.8, first=True)
    _check(yb, yb_ref, "output mismatch (multi-block, first call)")

    xb2 = xb * 1.3
    yb2 = jax.block_until_ready(norm_b(xb2))
    yb2_ref, _, _ = _ref_forward(xb2, mb_ref, sb_ref, 0.8, first=False)
    _check(yb2, yb2_ref, "output mismatch (multi-block, second call)")

    # ------ ragged row grid + unaligned spatial (lane-padding path) ------
    B4, C4, H4, W4 = 3, 4, 7, 9                              # BC = 12 (not /8), S = 63 -> pad 128
    xr = jax.random.normal(k5, (B4, C4, H4, W4), dtype=jnp.float32)
    xr = xr * (jnp.abs(xr) > 0.4).astype(jnp.float32)

    norm_r = RunningAverageNNZnormalizer(k=0.7, tile_rows=8)  # ragged last row block
    yr = jax.block_until_ready(norm_r(xr))
    yr_ref, mr_ref, sr_ref = _ref_forward(xr, None, None, 0.7, first=True)
    _check(yr, yr_ref, "output mismatch (ragged/padded, first call)")
    _check(norm_r.ra_mean, mr_ref, "ra_mean mismatch (ragged/padded)")
    _check(norm_r.ra_std, sr_ref, "ra_std mismatch (ragged/padded)")

    xr2 = xr * 0.75
    yr2 = jax.block_until_ready(norm_r(xr2))
    yr2_ref, _, _ = _ref_forward(xr2, mr_ref, sr_ref, 0.7, first=False)
    _check(yr2, yr2_ref, "output mismatch (ragged/padded, second call)")

    # ---------------- 3-D case ----------------
    B3, C3, H3 = 2, 4, 128
    x3 = jax.random.normal(k6, (B3, C3, H3), dtype=jnp.float32)
    x3 = x3 * (jnp.abs(x3) > 0.5).astype(jnp.float32)         # plenty of zeros

    norm_3 = RunningAverageNNZnormalizer(k=0.95)
    y3 = jax.block_until_ready(norm_3(x3))
    y3_ref, _, _ = _ref_forward(x3, None, None, 0.95, first=True)
    _check(y3, y3_ref, "output mismatch (3-D case)")

    # ---------------- bf16 input (native-dtype path) ----------------
    xh = x.astype(jnp.bfloat16)
    norm_h = RunningAverageNNZnormalizer(k=0.9)
    yh = jax.block_until_ready(norm_h(xh))
    assert yh.dtype == jnp.bfloat16, "output dtype should match input dtype"
    yh_ref, mh_ref, sh_ref = _ref_forward(xh.astype(jnp.float32), None, None, 0.9, first=True)
    _check(yh, yh_ref, "bf16 output mismatch", atol=3e-2, rtol=3e-2)
    _check(norm_h.ra_mean, mh_ref, "bf16 ra_mean mismatch")
    _check(norm_h.ra_std, sh_ref, "bf16 ra_std mismatch")

    print("KERNEL_OK")
</pallas_src>

<mosaic_0001>
module attributes {stable_mosaic.version = 11 : i64} {
  func.func @_nnz_norm_kernel(%arg0: i32, %arg1: memref<2xf32, #tpu.memory_space<smem>>, %arg2: memref<8x256xf32, #tpu.memory_space<vmem>>, %arg3: memref<8x2xf32, #tpu.memory_space<vmem>>, %arg4: memref<8x256xf32, #tpu.memory_space<vmem>>, %arg5: memref<8x2xf32, #tpu.memory_space<vmem>>) attributes {dimension_semantics = [#tpu.dimension_semantics<parallel>], iteration_bounds = array<i64: 1>, scalar_prefetch = 0 : i64, scratch_operands = 0 : i64, tpu.core_type = #tpu.core_type<tc>, window_params = [{transform_indices = @transform_0, window_bounds = array<i64: 2>}, {transform_indices = @transform_1, window_bounds = array<i64: 8, 256>}, {transform_indices = @transform_2, window_bounds = array<i64: 8, 2>}, {transform_indices = @transform_3, window_bounds = array<i64: 8, 256>}, {transform_indices = @transform_4, window_bounds = array<i64: 8, 2>}]} {
    %c0 = arith.constant 0 : index
    %0 = memref.load %arg1[%c0] : memref<2xf32, #tpu.memory_space<smem>>
    %c1 = arith.constant 1 : index
    %1 = memref.load %arg1[%c1] : memref<2xf32, #tpu.memory_space<smem>>
    %c0_0 = arith.constant 0 : index
    %c0_1 = arith.constant 0 : index
    %2 = vector.load %arg2[%c0_0, %c0_1] : memref<8x256xf32, #tpu.memory_space<vmem>>, vector<8x256xf32>
    %cst = arith.constant 0.000000e+00 : f32
    %3 = vector.broadcast %cst : f32 to vector<8x256xf32>
    %4 = arith.cmpf one, %2, %3 : vector<8x256xf32>
    %5 = arith.extui %4 : vector<8x256xi1> to vector<8x256xi32>
    %6 = arith.sitofp %5 : vector<8x256xi32> to vector<8x256xf32>
    %cst_2 = arith.constant dense<0.000000e+00> : vector<8xf32>
    %7 = vector.multi_reduction <add>, %6, %cst_2 [1] : vector<8x256xf32> to vector<8xf32>
    %8 = vector.shape_cast %7 : vector<8xf32> to vector<8x1xf32>
    %cst_3 = arith.constant 1.000000e+00 : f32
    %9 = vector.broadcast %cst_3 : f32 to vector<8x1xf32>
    %10 = arith.maximumf %8, %9 : vector<8x1xf32>
    %11 = tpu.reciprocal %10 : vector<8x1xf32> -> vector<8x1xf32>
    %cst_4 = arith.constant dense<0.000000e+00> : vector<8xf32>
    %12 = vector.multi_reduction <add>, %2, %cst_4 [1] : vector<8x256xf32> to vector<8xf32>
    %13 = vector.shape_cast %12 : vector<8xf32> to vector<8x1xf32>
    %14 = arith.mulf %2, %2 : vector<8x256xf32>
    %cst_5 = arith.constant dense<0.000000e+00> : vector<8xf32>
    %15 = vector.multi_reduction <add>, %14, %cst_5 [1] : vector<8x256xf32> to vector<8xf32>
    %16 = vector.shape_cast %15 : vector<8xf32> to vector<8x1xf32>
    %17 = arith.mulf %13, %11 : vector<8x1xf32>
    %18 = arith.mulf %16, %11 : vector<8x1xf32>
    %19 = arith.mulf %17, %17 : vector<8x1xf32>
    %20 = arith.subf %18, %19 : vector<8x1xf32>
    %cst_6 = arith.constant 9.99999997E-7 : f32
    %21 = vector.broadcast %cst_6 : f32 to vector<8x1xf32>
    %22 = arith.maximumf %20, %21 : vector<8x1xf32>
    %23 = math.sqrt %22 : vector<8x1xf32>
    %24 = tpu.concatenate %17, %23 in 1 : vector<8x1xf32>, vector<8x1xf32> -> vector<8x2xf32>
    %cst_7 = arith.constant 5.000000e-01 : f32
    %25 = arith.cmpf ogt, %1, %cst_7 : f32
    %c0_8 = arith.constant 0 : index
    %c0_9 = arith.constant 0 : index
    %26 = vector.load %arg3[%c0_8, %c0_9] : memref<8x2xf32, #tpu.memory_space<vmem>>, vector<8x2xf32>
    %27 = vector.broadcast %0 : f32 to vector<8x2xf32>
    %28 = arith.mulf %27, %26 : vector<8x2xf32>
    %cst_10 = arith.constant 1.000000e+00 : f32
    %29 = arith.subf %cst_10, %0 : f32
    %30 = vector.broadcast %29 : f32 to vector<8x2xf32>
    %31 = arith.mulf %30, %24 : vector<8x2xf32>
    %32 = arith.addf %28, %31 : vector<8x2xf32>
    %33 = arith.select %25, %24, %32 : vector<8x2xf32>
    %c0_11 = arith.constant 0 : index
    %c0_12 = arith.constant 0 : index
    %34 = vector.load %arg5[%c0_11, %c0_12] : memref<8x2xf32, #tpu.memory_space<vmem>>, vector<8x2xf32>
    tpu.vector_store %arg5[%c0_11, %c0_12], %33 {strides = array<i32>} : memref<8x2xf32, #tpu.memory_space<vmem>>, vector<8x2xf32>,
    %35 = vector.extract_strided_slice %33 {offsets = [0, 0], sizes = [8, 1], strides = [1, 1]} : vector<8x2xf32> to vector<8x1xf32>
    %36 = vector.extract_strided_slice %33 {offsets = [0, 1], sizes = [8, 1], strides = [1, 1]} : vector<8x2xf32> to vector<8x1xf32>
    %37 = tpu.reciprocal %36 : vector<8x1xf32> -> vector<8x1xf32>
    %cst_13 = arith.constant 0.000000e+00 : f32
    %38 = vector.broadcast %cst_13 : f32 to vector<8x256xf32>
    %39 = arith.cmpf one, %2, %38 : vector<8x256xf32>
    %40 = vector.broadcast %35 : vector<8x1xf32> to vector<8x256xf32>
    %41 = arith.subf %2, %40 : vector<8x256xf32>
    %42 = vector.broadcast %37 : vector<8x1xf32> to vector<8x256xf32>
    %43 = arith.mulf %41, %42 : vector<8x256xf32>
    %cst_14 = arith.constant 0.000000e+00 : f32
    %44 = vector.broadcast %cst_14 : f32 to vector<8x256xf32>
    %45 = arith.select %39, %43, %44 : vector<8x256xi1>, vector<8x256xf32>
    %c0_15 = arith.constant 0 : index
    %c0_16 = arith.constant 0 : index
    %46 = vector.load %arg4[%c0_15, %c0_16] : memref<8x256xf32, #tpu.memory_space<vmem>>, vector<8x256xf32>
    tpu.vector_store %arg4[%c0_15, %c0_16], %45 {strides = array<i32>} : memref<8x256xf32, #tpu.memory_space<vmem>>, vector<8x256xf32>,
    return
  }
  func.func @transform_0(%arg0: i32) -> i32 {
    %c0_i32 = arith.constant 0 : i32
    %c0_i32_0 = arith.constant 0 : i32
    return %c0_i32 : i32
  }
  func.func @transform_1(%arg0: i32) -> (i32, i32) {
    %c0_i32 = arith.constant 0 : i32
    %c0_i32_0 = arith.constant 0 : i32
    return %arg0, %c0_i32 : i32, i32
  }
  func.func @transform_2(%arg0: i32) -> (i32, i32) {
    %c0_i32 = arith.constant 0 : i32
    %c0_i32_0 = arith.constant 0 : i32
    return %arg0, %c0_i32 : i32, i32
  }
  func.func @transform_3(%arg0: i32) -> (i32, i32) {
    %c0_i32 = arith.constant 0 : i32
    %c0_i32_0 = arith.constant 0 : i32
    return %arg0, %c0_i32 : i32, i32
  }
  func.func @transform_4(%arg0: i32) -> (i32, i32) {
    %c0_i32 = arith.constant 0 : i32
    %c0_i32_0 = arith.constant 0 : i32
    return %arg0, %c0_i32 : i32, i32
  }
}

</mosaic_0001>

<llo_original>
// kernel: _nnz_norm_call_impl.1
$region0: #{_nnz_norm_call_impl.1}
  #allocation0 [shape = 'u32[]', space=smem, size = 0x4, offset = 0x4, fixed_abs, tag = 'smem constant byte address 0x4 - core index']
  #allocation1 [shape = 'u32[144,128]{1,0:T(1,128)}', space=vmem, size = 0x12000, scoped, tag = 'internal scratch']
  %s0 = inlined_call_operand.vmem [shape: f32[2], index: 0, kind: input, shape index: {}]
  %s1 = inlined_call_operand.hbm [shape: f32[8,256], index: 1, kind: input, shape index: {}]
  %s2 = inlined_call_operand.vmem [shape: f32[8,2], index: 2, kind: input, shape index: {}, may-alias: {2,4}]
  %s3 = inlined_call_operand.hbm [shape: f32[8,256], index: 3, kind: output, shape index: {0}]
  %s4 = inlined_call_operand.vmem [shape: f32[8,2], index: 4, kind: output, shape index: {1}, may-alias: {2,4}]
  %5 = xla_tuple %s3, %s4
  %s6 = sld [smem:[#allocation0]]
  $region38: #{_nnz_norm_call_impl.1} parent=0
    _
  %s8 = ssub.s32 1, %s6
  %s9 = scalar_select 0, %s8, %s6
  $region1: #{_nnz_norm_call_impl.1} parent=0
    #allocation2 [shape = 'u8[512]{0}', space=smem, size = 0x200, scoped, tag = 'input window, operand 0, single buffered']
    #allocation3 [shape = 's32[1]{0}', space=sflag, size = 0x4, scoped, tag = 'scoped memory for _nnz_norm_call_impl.1']
    #allocation4 [shape = 's32[1]{0}', space=sflag, size = 0x4, scoped, tag = 'scoped memory for _nnz_norm_call_impl.1']
    #allocation5 [shape = 's32[1]{0}', space=sflag, size = 0x4, scoped, tag = 'scoped memory for _nnz_norm_call_impl.1']
    #allocation6 [shape = 'u8[8192]{0}', space=vmem, size = 0x2000, scoped, tag = 'input window, operand 1, single buffered']
    #allocation7 [shape = 'u8[8192]{0}', space=vmem, size = 0x2000, scoped, tag = 'output window, operand 0, single buffered']
    %10 = vsyncpa [#allocation5], 0
    %11 = vsyncpa [#allocation3], 0
    %12 = vsyncpa [#allocation4], 0
    // Predicated region
    $region2: #{_nnz_norm_call_impl.1} parent=1 // pred_check
      _
    $region3: #{_nnz_norm_call_impl.1} parent=1 // pred_check_branch
      %14 = sbr.rel (0) target = $region5
    $region4: #{_nnz_norm_call_impl.1} parent=1 // pred_region
      %s16 = ssub.s32 16, 16
      %17 = vsyncadd [#allocation5], %s16
      %s19 = sshll.u32 %s0, 4
      %s20 = int_to_ptr.vmem [resolvable:$true] %s19
      %22 = dma.vmem_to_smem %s20, 16, [#allocation2], [#allocation5]
    $region5: #{_nnz_norm_call_impl.1} parent=1 // pred_fallthru
      _
    // Predicated region
    $region6: #{_nnz_norm_call_impl.1} parent=1 // pred_check
      _
    $region7: #{_nnz_norm_call_impl.1} parent=1 // pred_check_branch
      %24 = sbr.rel (0) target = $region9
    $region8: #{_nnz_norm_call_impl.1} parent=1 // pred_region
      %s26 = ssub.s32 256, 256
      %27 = vsyncadd [#allocation3], %s26
      %s29 = sshll.u32 [#allocation6], 4
      %s30 = int_to_ptr.vmem [resolvable:$true] %s29
      %32 = dma.hbm_to_vmem [thread:$0]  %s1, 256, %s30, [#allocation3]
    $region9: #{_nnz_norm_call_impl.1} parent=1 // pred_fallthru
      _
    // Predicated region
    $region10: #{_nnz_norm_call_impl.1} parent=1 // pred_check
      _
    $region11: #{_nnz_norm_call_impl.1} parent=1 // pred_check_branch
      %34 = sbr.rel (0) target = $region13
    $region12: #{_nnz_norm_call_impl.1} parent=1 // pred_region
      _
    $region13: #{_nnz_norm_call_impl.1} parent=1 // pred_fallthru
      _
    // Predicated region
    $region14: #{_nnz_norm_call_impl.1} parent=1 // pred_check
      _
    $region15: #{_nnz_norm_call_impl.1} parent=1 // pred_check_branch
      %36 = sbr.rel (0) target = $region17
    $region16: #{_nnz_norm_call_impl.1} parent=1 // pred_region
      %37 = dma.done [#allocation5], 16
    $region17: #{_nnz_norm_call_impl.1} parent=1 // pred_fallthru
      _
    // Predicated region
    $region18: #{_nnz_norm_call_impl.1} parent=1 // pred_check
      _
    $region19: #{_nnz_norm_call_impl.1} parent=1 // pred_check_branch
      %39 = sbr.rel (0) target = $region21
    $region20: #{_nnz_norm_call_impl.1} parent=1 // pred_region
      %40 = dma.done [#allocation3], 256
    $region21: #{_nnz_norm_call_impl.1} parent=1 // pred_fallthru
      _
    %41 = sfence
    %s42 = sld [smem:[#allocation2]]
    %s43 = sld [smem:[#allocation2 + $0x1]]
    %v44 = vld [vmem:[#allocation6] sm:$0xff]
    %v45 = vld [vmem:[#allocation6 + $0x8] sm:$0xff]
    %vm46 = vcmp.ne.f32.partialorder %v44, 0.0
    %vm47 = vcmp.ne.f32.partialorder %v45, 0.0
    %v48 = vsel %vm46, 1, 0
    %v49 = vsel %vm47, 1, 0
    %v50 = vcvt.s32.f32 %v48
    %v51 = vcvt.s32.f32 %v49
    %v52 = vadd.f32 %v50, %v51
    %53 = vadd.xlane.f32.xlu0 %v52
    %v54 = vpop.xlane.xlu0 %53
    %v55 = vmax.f32 %v54, 1.0
    %v56 = vrcp.pop %v55
    %v57 = vadd.f32 %v44, %v45
    %58 = vadd.xlane.f32.xlu0 %v57
    %v59 = vpop.xlane.xlu0 %58
    %v60 = vmul.f32 %v44, %v44
    %v61 = vmul.f32 %v45, %v45
    %v62 = vadd.f32 %v60, %v61
    %63 = vadd.xlane.f32.xlu0 %v62
    %v64 = vpop.xlane.xlu0 %63
    %v65 = vmul.f32 %v59, %v56
    %v66 = vmul.f32 %v64, %v56
    %v67 = vmul.f32 %v65, %v65
    %v68 = vsub.f32 %v66, %v67
    %v69 = vmax.f32 %v68, 1e-06
    %v70 = vrsqrt.pop %v69
    %v71 = vmul.f32 %v69, %v70
    %vm72 = vcmp.eq.f32.partialorder %v69, inf
    %v73 = vsel %vm72, %v69, %v71
    %vm74 = vcmp.eq.f32.partialorder %v69, 0.0
    %v75 = vand.u32 %v69, 2147483648
    %v76 = vsel %vm74, %v75, %v73
    %vm77 = vcmask 7168
    %v78 = vsel %vm77, %v65, %v76
    %p79 = scmp.gt.f32.partialorder %s43, 0.5
    %v80 = vld [vmem:[%s2] sm:$0xff]
    %v81 = vstv %s42
    %v82 = vmul.f32 %v81, %v80
    %s83 = ssub.f32 1.0, %s42
    %v84 = vstv %s83
    %v85 = vmul.f32 %v84, %v78
    %v86 = vadd.f32 %v82, %v85
    %s87 = scalar_select %p79, 1, 0
    %v88 = vstv %s87
    %vm89 = vcmp.eq.s32.totalorder %v88, 1
    %v90 = vsel %vm89, %v78, %v86
    %vm91 = vcmask 15360
    %92 = vst.msk [vmem:[%s4] sm:$0xff] %vm91, %v90
    %v93 = vrcp.pop %v90
    %95 = vset.pattern.permute.xlu0 0
    %96 = vperm.xlu0 %95, %v90
    %v97 = vpop.permute.xlu0 %96
    %v99 = vsub.f32 %v44, %v97
    %v100 = vsub.f32 %v45, %v97
    %102 = vset.pattern.permute.xlu0 1
    %103 = vperm.xlu0 %102, %v93
    %v104 = vpop.permute.xlu0 %103
    %v106 = vmul.f32 %v99, %v104
    %v107 = vmul.f32 %v100, %v104
    %v108 = vsel %vm46, %v106, 0.0
    %v109 = vsel %vm47, %v107, 0.0
    %110 = vst [vmem:[#allocation7] sm:$0xff] %v108
    %111 = vst [vmem:[#allocation7 + $0x8] sm:$0xff] %v109
    // Predicated region
    $region22: #{_nnz_norm_call_impl.1} parent=1 // pred_check
      _
    $region23: #{_nnz_norm_call_impl.1} parent=1 // pred_check_branch
      %113 = sbr.rel (0) target = $region25
    $region24: #{_nnz_norm_call_impl.1} parent=1 // pred_region
      %s115 = ssub.s32 256, 256
      %116 = vsyncadd [#allocation4], %s115
      %s118 = sshll.u32 [#allocation7], 4
      %s119 = int_to_ptr.vmem [resolvable:$true] %s118
      %121 = dma.vmem_to_hbm [thread:$0]  %s119, 256, %s3, [#allocation4]
    $region25: #{_nnz_norm_call_impl.1} parent=1 // pred_fallthru
      _
    // Predicated region
    $region26: #{_nnz_norm_call_impl.1} parent=1 // pred_check
      _
    $region27: #{_nnz_norm_call_impl.1} parent=1 // pred_check_branch
      %123 = sbr.rel (0) target = $region29
    $region28: #{_nnz_norm_call_impl.1} parent=1 // pred_region
      _
    $region29: #{_nnz_norm_call_impl.1} parent=1 // pred_fallthru
      _
    // Predicated region
    $region30: #{_nnz_norm_call_impl.1} parent=1 // pred_check
      _
    $region31: #{_nnz_norm_call_impl.1} parent=1 // pred_check_branch
      %125 = sbr.rel (0) target = $region33
    $region32: #{_nnz_norm_call_impl.1} parent=1 // pred_region
      %126 = dma.done [#allocation4], 256
    $region33: #{_nnz_norm_call_impl.1} parent=1 // pred_fallthru
      _
    // Predicated region
    $region34: #{_nnz_norm_call_impl.1} parent=1 // pred_check
      _
    $region35: #{_nnz_norm_call_impl.1} parent=1 // pred_check_branch
      %128 = sbr.rel (0) target = $region37
    $region36: #{_nnz_norm_call_impl.1} parent=1 // pred_region
      _
    $region37: #{_nnz_norm_call_impl.1} parent=1 // pred_fallthru
      _
    %129 = vsyncpa [#allocation3], 1
    %130 = vsyncpa [#allocation4], 1
    %131 = vsyncpa [#allocation5], 1

</llo_original>
